<compile_context>
chip_gen: v6e
topology: v6e:2x2x1
jax: 0.10.0
libtpu: 0.0.40
codegen_flags: <defaults>
</compile_context>

<pallas_src>
import math

import jax
import jax.numpy as jnp
from jax.experimental import pallas as pl
from jax.experimental.pallas import tpu as pltpu

_TWO_PI = 2.0 * math.pi
_HALF_PI = 0.5 * math.pi


def _pos_emb_kernel(x_ref, w2pi_ref, phase_ref, sel_ref, o_ref):
    # x_ref:    (1, TB)  lane-dense batch row
    # w2pi_ref: (D, 1)   = 2*pi * [0, w, w]          (row 0 unused -> 0)
    # phase_ref:(D, 1)   = [0, 0..0, pi/2..pi/2]     (cos block offset)
    # sel_ref:  (D, 1)   = [1, 0, ..., 0]            (selects raw x on row 0)
    # o_ref:    (D, TB)  transposed output slab
    x = x_ref[...].astype(jnp.float32)                    # (1, TB)
    w2pi = w2pi_ref[...].astype(jnp.float32)               # (D, 1)
    phase = phase_ref[...].astype(jnp.float32)              # (D, 1)
    sel = sel_ref[...].astype(jnp.float32)                  # (D, 1)

    t = x * w2pi + phase                                    # (D, TB) broadcast
    # Row 0: t == 0 exactly (w=phase=0) -> sin(t)=0, so "+ sel*x" restores x.
    out = jnp.sin(t) + sel * x                               # single transcendental
    o_ref[...] = out.astype(o_ref.dtype)


def _choose_batch_tile(B, out_dim, target_bytes=2 << 20):
    """Lane-axis batch tile: full batch when small, else a 128-multiple sized so
    the f32 output block is ~target_bytes, with >=4 grid steps for large B."""
    if B <= 512:
        return B  # one full block (block_shape == array dims is always legal)
    tb = max(128, (target_bytes // (4 * out_dim)) // 128 * 128)
    # keep at least 4 grid steps: pipeline depth + both v7x TensorCores get work
    tb = min(tb, max(128, (pl.cdiv(B, 4) // 128) * 128))
    return tb


def random_or_learned_sinusoidal_pos_emb(x, weights, *, out_dtype=None):
    """x: (B,) timesteps; weights: (half_dim,). Returns (B, 2*half_dim + 1)."""
    B = x.shape[0]
    half_dim = weights.shape[0]
    out_dim = 2 * half_dim + 1
    if out_dtype is None:
        out_dtype = jnp.promote_types(x.dtype, weights.dtype)

    # --- parameter plumbing (built once, tiny) --------------------------------
    x_row = x.reshape(1, B).astype(jnp.float32)
    wf = weights.astype(jnp.float32).reshape(-1)
    w2pi_col = (_TWO_PI * jnp.concatenate(
        [jnp.zeros((1,), jnp.float32), wf, wf])).reshape(out_dim, 1)
    phase_col = jnp.concatenate(
        [jnp.zeros((1 + half_dim,), jnp.float32),
         jnp.full((half_dim,), _HALF_PI, jnp.float32)]).reshape(out_dim, 1)
    sel_col = jnp.zeros((out_dim, 1), jnp.float32).at[0, 0].set(1.0)

    tb = _choose_batch_tile(B, out_dim)
    grid = (pl.cdiv(B, tb),)

    cost = pl.CostEstimate(
        flops=4 * B * out_dim,                 # mul + add + fma for the sel row
        transcendentals=B * out_dim,           # single sin per element
        bytes_accessed=(B + 3 * out_dim + B * out_dim) * 4,
    )

    out_t = pl.pallas_call(
        _pos_emb_kernel,
        out_shape=jax.ShapeDtypeStruct((out_dim, B), out_dtype),
        grid_spec=pltpu.PrefetchScalarGridSpec(
            num_scalar_prefetch=0,
            grid=grid,
            in_specs=[
                pl.BlockSpec((1, tb), lambda i: (0, i)),          # x (lane-dense)
                pl.BlockSpec((out_dim, 1), lambda i: (0, 0)),      # 2*pi*w
                pl.BlockSpec((out_dim, 1), lambda i: (0, 0)),      # phase
                pl.BlockSpec((out_dim, 1), lambda i: (0, 0)),      # sel
            ],
            out_specs=pl.BlockSpec((out_dim, tb), lambda i: (0, i)),
        ),
        compiler_params=pltpu.CompilerParams(
            dimension_semantics=("parallel",),
        ),
        cost_estimate=cost,
    )(x_row, w2pi_col, phase_col, sel_col)

    # Wrapper-side transpose back to the module's (B, out_dim) layout.  A
    # consumer that can take the (out_dim, B) slab directly can skip this.
    return out_t.T


def _reference(x, weights):
    out_dtype = jnp.promote_types(x.dtype, weights.dtype)
    xf = x.astype(jnp.float32).reshape(-1, 1)
    wf = weights.astype(jnp.float32).reshape(1, -1)
    freqs = xf * wf * _TWO_PI
    return jnp.concatenate([xf, jnp.sin(freqs), jnp.cos(freqs)],
                           axis=-1).astype(out_dtype)


if __name__ == "__main__":
    key = jax.random.PRNGKey(0)
    k_x, k_w, k_x2 = jax.random.split(key, 3)

    # Small shapes consistent with the module: dim=8 -> half_dim=4, batch=2.
    B, dim = 2, 8
    half_dim = dim // 2
    x = jax.random.normal(k_x, (B,), dtype=jnp.float32)            # timesteps
    # deterministic stand-in for nn.Parameter(torch.randn(half_dim))
    weights = jax.random.normal(k_w, (half_dim,), dtype=jnp.float32)

    out = random_or_learned_sinusoidal_pos_emb(x, weights)
    jax.block_until_ready(out)
    ref = _reference(x, weights)
    assert out.shape == (B, dim + 1)
    assert jnp.allclose(out, ref, atol=1e-4, rtol=1e-4), float(
        jnp.max(jnp.abs(out - ref)))

    # Lock in the tiled path with a partial last block (B not a multiple of 128).
    B2 = 700
    x2 = jax.random.normal(k_x2, (B2,), dtype=jnp.float32)
    out2 = random_or_learned_sinusoidal_pos_emb(x2, weights)
    jax.block_until_ready(out2)
    ref2 = _reference(x2, weights)
    assert out2.shape == (B2, dim + 1)
    assert jnp.allclose(out2, ref2, atol=1e-4, rtol=1e-4), float(
        jnp.max(jnp.abs(out2 - ref2)))

    print("KERNEL_OK")
</pallas_src>

<mosaic_0001>
module attributes {stable_mosaic.version = 11 : i64} {
  func.func @_pos_emb_kernel(%arg0: i32, %arg1: memref<1x2xf32, #tpu.memory_space<vmem>>, %arg2: memref<9x1xf32, #tpu.memory_space<vmem>>, %arg3: memref<9x1xf32, #tpu.memory_space<vmem>>, %arg4: memref<9x1xf32, #tpu.memory_space<vmem>>, %arg5: memref<9x2xf32, #tpu.memory_space<vmem>>) attributes {dimension_semantics = [#tpu.dimension_semantics<parallel>], iteration_bounds = array<i64: 1>, scalar_prefetch = 0 : i64, scratch_operands = 0 : i64, tpu.core_type = #tpu.core_type<tc>, window_params = [{transform_indices = @transform_0, window_bounds = array<i64: 1, 2>}, {pipeline_mode = #tpu.pipeline_mode<synchronous>, transform_indices = @transform_1, window_bounds = array<i64: 9, 1>}, {pipeline_mode = #tpu.pipeline_mode<synchronous>, transform_indices = @transform_2, window_bounds = array<i64: 9, 1>}, {pipeline_mode = #tpu.pipeline_mode<synchronous>, transform_indices = @transform_3, window_bounds = array<i64: 9, 1>}, {transform_indices = @transform_4, window_bounds = array<i64: 9, 2>}]} {
    %c0 = arith.constant 0 : index
    %c0_0 = arith.constant 0 : index
    %0 = vector.load %arg1[%c0, %c0_0] : memref<1x2xf32, #tpu.memory_space<vmem>>, vector<1x2xf32>
    %c0_1 = arith.constant 0 : index
    %c0_2 = arith.constant 0 : index
    %1 = vector.load %arg2[%c0_1, %c0_2] : memref<9x1xf32, #tpu.memory_space<vmem>>, vector<9x1xf32>
    %c0_3 = arith.constant 0 : index
    %c0_4 = arith.constant 0 : index
    %2 = vector.load %arg3[%c0_3, %c0_4] : memref<9x1xf32, #tpu.memory_space<vmem>>, vector<9x1xf32>
    %c0_5 = arith.constant 0 : index
    %c0_6 = arith.constant 0 : index
    %3 = vector.load %arg4[%c0_5, %c0_6] : memref<9x1xf32, #tpu.memory_space<vmem>>, vector<9x1xf32>
    %4 = vector.broadcast %0 : vector<1x2xf32> to vector<9x2xf32>
    %5 = vector.broadcast %1 : vector<9x1xf32> to vector<9x2xf32>
    %6 = arith.mulf %4, %5 : vector<9x2xf32>
    %7 = vector.broadcast %2 : vector<9x1xf32> to vector<9x2xf32>
    %8 = arith.addf %6, %7 : vector<9x2xf32>
    %9 = math.sin %8 : vector<9x2xf32>
    %10 = vector.broadcast %3 : vector<9x1xf32> to vector<9x2xf32>
    %11 = vector.broadcast %0 : vector<1x2xf32> to vector<9x2xf32>
    %12 = arith.mulf %10, %11 : vector<9x2xf32>
    %13 = arith.addf %9, %12 : vector<9x2xf32>
    %c0_7 = arith.constant 0 : index
    %c0_8 = arith.constant 0 : index
    %14 = vector.load %arg5[%c0_7, %c0_8] : memref<9x2xf32, #tpu.memory_space<vmem>>, vector<9x2xf32>
    tpu.vector_store %arg5[%c0_7, %c0_8], %13 {strides = array<i32>} : memref<9x2xf32, #tpu.memory_space<vmem>>, vector<9x2xf32>,
    return
  }
  func.func @transform_0(%arg0: i32) -> (i32, i32) {
    %c0_i32 = arith.constant 0 : i32
    %c0_i32_0 = arith.constant 0 : i32
    return %c0_i32, %arg0 : i32, i32
  }
  func.func @transform_1(%arg0: i32) -> (i32, i32) {
    %c0_i32 = arith.constant 0 : i32
    %c0_i32_0 = arith.constant 0 : i32
    %c0_i32_1 = arith.constant 0 : i32
    return %c0_i32, %c0_i32_0 : i32, i32
  }
  func.func @transform_2(%arg0: i32) -> (i32, i32) {
    %c0_i32 = arith.constant 0 : i32
    %c0_i32_0 = arith.constant 0 : i32
    %c0_i32_1 = arith.constant 0 : i32
    return %c0_i32, %c0_i32_0 : i32, i32
  }
  func.func @transform_3(%arg0: i32) -> (i32, i32) {
    %c0_i32 = arith.constant 0 : i32
    %c0_i32_0 = arith.constant 0 : i32
    %c0_i32_1 = arith.constant 0 : i32
    return %c0_i32, %c0_i32_0 : i32, i32
  }
  func.func @transform_4(%arg0: i32) -> (i32, i32) {
    %c0_i32 = arith.constant 0 : i32
    %c0_i32_0 = arith.constant 0 : i32
    return %c0_i32, %arg0 : i32, i32
  }
}

</mosaic_0001>

<llo_original>
// kernel: tpu_custom_call.1
$region0: #{tpu_custom_call.1}
  #allocation0 [shape = 'u32[]', space=smem, size = 0x4, offset = 0x4, fixed_abs, tag = 'smem constant byte address 0x4 - core index']
  #allocation1 [shape = 'u32[144,128]{1,0:T(1,128)}', space=vmem, size = 0x12000, scoped, tag = 'internal scratch']
  %s0 = inlined_call_operand.vmem [shape: f32[1,2], index: 0, kind: input, shape index: {}]
  %s1 = inlined_call_operand.vmem [shape: f32[9,1], index: 1, kind: input, shape index: {}]
  %s2 = inlined_call_operand.vmem [shape: f32[9,1], index: 2, kind: input, shape index: {}]
  %s3 = inlined_call_operand.vmem [shape: f32[9,1], index: 3, kind: input, shape index: {}]
  %s4 = inlined_call_operand.vmem [shape: f32[9,2], index: 4, kind: output, shape index: {}]
  %s5 = sld [smem:[#allocation0]]
  $region26: #{tpu_custom_call.1} parent=0
    _
  %s7 = ssub.s32 1, %s5
  %s8 = scalar_select 0, %s7, %s5
  // Predicated region
  $region2: #{tpu_custom_call.1} parent=0 // pred_check
    _
  $region3: #{tpu_custom_call.1} parent=0 // pred_check_branch
    %10 = sbr.rel (0) target = $region5
  $region4: #{tpu_custom_call.1} parent=0 // pred_region
    _
  $region5: #{tpu_custom_call.1} parent=0 // pred_fallthru
    _
  // Predicated region
  $region6: #{tpu_custom_call.1} parent=0 // pred_check
    _
  $region7: #{tpu_custom_call.1} parent=0 // pred_check_branch
    %12 = sbr.rel (0) target = $region9
  $region8: #{tpu_custom_call.1} parent=0 // pred_region
    _
  $region9: #{tpu_custom_call.1} parent=0 // pred_fallthru
    _
  // Predicated region
  $region10: #{tpu_custom_call.1} parent=0 // pred_check
    _
  $region11: #{tpu_custom_call.1} parent=0 // pred_check_branch
    %14 = sbr.rel (0) target = $region13
  $region12: #{tpu_custom_call.1} parent=0 // pred_region
    _
  $region13: #{tpu_custom_call.1} parent=0 // pred_fallthru
    _
  // Predicated region
  $region14: #{tpu_custom_call.1} parent=0 // pred_check
    _
  $region15: #{tpu_custom_call.1} parent=0 // pred_check_branch
    %16 = sbr.rel (0) target = $region17
  $region16: #{tpu_custom_call.1} parent=0 // pred_region
    _
  $region17: #{tpu_custom_call.1} parent=0 // pred_fallthru
    _
  %v17 = vld [vmem:[%s0] sm:$0x1]
  %v18 = vld [vmem:[%s1] sm:$0xff]
  %v19 = vld [vmem:[%s1 + $0x8] sm:$0x1]
  %v20 = vld [vmem:[%s2] sm:$0xff]
  %v21 = vld [vmem:[%s2 + $0x8] sm:$0x1]
  %v22 = vld [vmem:[%s3] sm:$0xff]
  %v23 = vld [vmem:[%s3 + $0x8] sm:$0x1]
  %v25 = vlaneseq
  %v26 = vshrl.u32 %v25, 7
  %v27 = vsub.s32 0, %v26
  %v28 = vrot.slane %v17, %v27
  %31 = vset.pattern.permute.xlu0 0
  %32 = vperm.xlu0 %31, %v18
  %v33 = vpop.permute.xlu0 %32
  %36 = vset.pattern.permute.xlu0 0
  %37 = vperm.xlu0 %36, %v19
  %v38 = vpop.permute.xlu0 %37
  %v40 = vmul.f32 %v28, %v33
  %v41 = vmul.f32 %v28, %v38
  %43 = vset.pattern.permute.xlu0 0
  %44 = vperm.xlu0 %43, %v20
  %v45 = vpop.permute.xlu0 %44
  %48 = vset.pattern.permute.xlu0 0
  %49 = vperm.xlu0 %48, %v21
  %v50 = vpop.permute.xlu0 %49
  %v52 = vadd.f32 %v40, %v45
  %v53 = vadd.f32 %v41, %v50
  %v54 = vand.u32 2147483647, %v52
  %vm55 = vcmp.le.f32.partialorder %v54, 0.7853982
  %vm56 = vcmp.lt.s32.totalorder %v52, 0
  %v57 = vand.u32 %v52, 2139095040
  %v58 = vshrl.u32 %v57, 23
  %v59 = vsub.s32 %v58, 127
  %v60 = vand.u32 2147483647, %v52
  %v61 = vand.u32 %v60, 8388607
  %v62 = vor.u32 %v61, 8388608
  %v63 = vsub.s32 0, %v62
  %v64 = vadd.s32 %v59, 1
  %vm65 = vcmp.gt.s32.totalorder %v64, 0
  %v66 = vsel %vm65, %v64, 0
  %v67 = vshrl.u32 %v66, 5
  %v68 = vand.u32 %v66, 31
  %v69 = vsub.s32 32, %v68
  %v70 = vshrl.u32 683565275, %v69
  %v71 = vshll.u32 683565275, %v68
  %v72 = vshrl.u32 2475754826, %v69
  %v73 = vor.u32 %v71, %v72
  %v74 = vshll.u32 2475754826, %v68
  %v75 = vshrl.u32 2131351028, %v69
  %v76 = vor.u32 %v74, %v75
  %v77 = vshll.u32 2131351028, %v68
  %v78 = vshrl.u32 2102212464, %v69
  %v79 = vor.u32 %v77, %v78
  %v80 = vshll.u32 2102212464, %v68
  %v81 = vshrl.u32 920167782, %v69
  %v82 = vor.u32 %v80, %v81
  %v83 = vshll.u32 920167782, %v68
  %v84 = vshrl.u32 1326507024, %v69
  %v85 = vor.u32 %v83, %v84
  %vm86 = vcmp.lt.s32.totalorder %v67, 1
  %vm87 = vcmp.lt.s32.totalorder %v67, 2
  %vm88 = vcmp.lt.s32.totalorder %v67, 3
  %vm89 = vcmp.lt.s32.totalorder %v67, 4
  %v90 = vsel %vm86, %v70, %v73
  %v91 = vsel %vm89, %v79, 2102212464
  %v92 = vsel %vm88, %v76, %v91
  %v93 = vsel %vm87, %v90, %v92
  %v94 = vsel %vm86, %v73, %v76
  %v95 = vsel %vm89, %v82, 920167782
  %v96 = vsel %vm88, %v79, %v95
  %v97 = vsel %vm87, %v94, %v96
  %v98 = vsel %vm86, %v76, %v79
  %v99 = vsel %vm89, %v85, 1326507024
  %v100 = vsel %vm88, %v82, %v99
  %v101 = vsel %vm87, %v98, %v100
  %v102 = vshll.u32 %v62, 8
  %v103 = vmul.u32.u64.compose %v102, %v101
  %v104 = vextract.low.u32 %v103
  %v105 = vextract.high.u32 %v103
  %v106 = vmul.u32.u64.compose %v102, %v97
  %v107 = vextract.low.u32 %v106
  %v108 = vextract.high.u32 %v106
  %v109 = vmul.u32 %v102, %v93
  %v110 = vadd.s32 %v105, %v107
  %vm111 = vc.u32 %v105, %v107
  %v112 = vadd.s32 %v108, 1
  %v113 = vsel %vm111, %v112, %v108
  %v114 = vadd.s32 %v109, %v113
  %v115 = vadd.s32 %v114, 536870912
  %v116 = vshrl.u32 %v115, 30
  %v117 = vshll.u32 %v116, 30
  %v118 = vsub.s32 %v114, %v117
  %vm119 = vcmp.lt.s32.totalorder %v118, 0
  %v120 = vsub.s32 0, %v118
  %v121 = vsel %vm119, %v120, %v118
  %v122 = vclz %v121
  %v123 = vsub.s32 %v122, 2
  %vm124 = vcmp.gt.s32.totalorder 0, %v123
  %v125 = vsel %vm124, 0, %v123
  %v126 = vsub.s32 32, %v125
  %v127 = vshll.u32 %v118, %v125
  %v128 = vshrl.u32 %v110, %v126
  %v129 = vor.u32 %v127, %v128
  %v130 = vsub.s32 4294967266, %v125
  %v131 = vadd.s32 %v130, 127
  %v132 = vshll.u32 %v131, 23
  %v133 = vor.u32 4788187, %v132
  %v134 = vand.u32 2147483647, %v133
  %v136 = vcvt.s32.f32 %v129
  %v137 = vmul.f32 %v136, %v134
  %v138 = vxor.u32 %v137, 2147483648
  %v139 = vsel %vm56, %v138, %v137
  %v140 = vsub.s32 4, %v116
  %v141 = vsel %vm56, %v140, %v116
  %v142 = vsel %vm55, %v52, %v139
  %v143 = vsel %vm55, 0, %v141
  %v144 = vcosq.f32.pop %v142
  %v145 = vsinq.f32.pop %v142
  %vm146 = vweird.f32 %v52
  %v147 = vadd.s32 %v143, 3
  %v148 = vand.u32 %v147, 3
  %vm149 = vcmp.lt.s32.totalorder %v148, 2
  %vm150 = vcmp.eq.s32.totalorder %v148, 0
  %v151 = vxor.u32 %v145, 2147483648
  %v152 = vsel %vm150, %v144, %v151
  %vm153 = vcmp.eq.s32.totalorder %v148, 2
  %v154 = vxor.u32 %v144, 2147483648
  %v155 = vsel %vm153, %v154, %v145
  %v156 = vsel %vm149, %v152, %v155
  %v157 = vsel %vm146, nan, %v156
  %v158 = vand.u32 2147483647, %v53
  %vm159 = vcmp.le.f32.partialorder %v158, 0.7853982
  %vm160 = vcmp.lt.s32.totalorder %v53, 0
  %v161 = vand.u32 %v53, 2139095040
  %v162 = vshrl.u32 %v161, 23
  %v163 = vsub.s32 %v162, 127
  %v164 = vand.u32 2147483647, %v53
  %v165 = vand.u32 %v164, 8388607
  %v166 = vor.u32 %v165, 8388608
  %v167 = vsub.s32 0, %v166
  %v168 = vadd.s32 %v163, 1
  %vm169 = vcmp.gt.s32.totalorder %v168, 0
  %v170 = vsel %vm169, %v168, 0
  %v171 = vshrl.u32 %v170, 5
  %v172 = vand.u32 %v170, 31
  %v173 = vsub.s32 32, %v172
  %v174 = vshrl.u32 683565275, %v173
  %v175 = vshll.u32 683565275, %v172
  %v176 = vshrl.u32 2475754826, %v173
  %v177 = vor.u32 %v175, %v176
  %v178 = vshll.u32 2475754826, %v172
  %v179 = vshrl.u32 2131351028, %v173
  %v180 = vor.u32 %v178, %v179
  %v181 = vshll.u32 2131351028, %v172
  %v182 = vshrl.u32 2102212464, %v173
  %v183 = vor.u32 %v181, %v182
  %v184 = vshll.u32 2102212464, %v172
  %v185 = vshrl.u32 920167782, %v173
  %v186 = vor.u32 %v184, %v185
  %v187 = vshll.u32 920167782, %v172
  %v188 = vshrl.u32 1326507024, %v173
  %v189 = vor.u32 %v187, %v188
  %vm190 = vcmp.lt.s32.totalorder %v171, 1
  %vm191 = vcmp.lt.s32.totalorder %v171, 2
  %vm192 = vcmp.lt.s32.totalorder %v171, 3
  %vm193 = vcmp.lt.s32.totalorder %v171, 4
  %v194 = vsel %vm190, %v174, %v177
  %v195 = vsel %vm193, %v183, 2102212464
  %v196 = vsel %vm192, %v180, %v195
  %v197 = vsel %vm191, %v194, %v196
  %v198 = vsel %vm190, %v177, %v180
  %v199 = vsel %vm193, %v186, 920167782
  %v200 = vsel %vm192, %v183, %v199
  %v201 = vsel %vm191, %v198, %v200
  %v202 = vsel %vm190, %v180, %v183
  %v203 = vsel %vm193, %v189, 1326507024
  %v204 = vsel %vm192, %v186, %v203
  %v205 = vsel %vm191, %v202, %v204
  %v206 = vshll.u32 %v166, 8
  %v207 = vmul.u32.u64.compose %v206, %v205
  %v208 = vextract.low.u32 %v207
  %v209 = vextract.high.u32 %v207
  %v210 = vmul.u32.u64.compose %v206, %v201
  %v211 = vextract.low.u32 %v210
  %v212 = vextract.high.u32 %v210
  %v213 = vmul.u32 %v206, %v197
  %v214 = vadd.s32 %v209, %v211
  %vm215 = vc.u32 %v209, %v211
  %v216 = vadd.s32 %v212, 1
  %v217 = vsel %vm215, %v216, %v212
  %v218 = vadd.s32 %v213, %v217
  %v219 = vadd.s32 %v218, 536870912
  %v220 = vshrl.u32 %v219, 30
  %v221 = vshll.u32 %v220, 30
  %v222 = vsub.s32 %v218, %v221
  %vm223 = vcmp.lt.s32.totalorder %v222, 0
  %v224 = vsub.s32 0, %v222
  %v225 = vsel %vm223, %v224, %v222
  %v226 = vclz %v225
  %v227 = vsub.s32 %v226, 2
  %vm228 = vcmp.gt.s32.totalorder 0, %v227
  %v229 = vsel %vm228, 0, %v227
  %v230 = vsub.s32 32, %v229
  %v231 = vshll.u32 %v222, %v229
  %v232 = vshrl.u32 %v214, %v230
  %v233 = vor.u32 %v231, %v232
  %v234 = vsub.s32 4294967266, %v229
  %v235 = vadd.s32 %v234, 127
  %v236 = vshll.u32 %v235, 23
  %v237 = vor.u32 4788187, %v236
  %v238 = vand.u32 2147483647, %v237
  %v240 = vcvt.s32.f32 %v233
  %v241 = vmul.f32 %v240, %v238
  %v242 = vxor.u32 %v241, 2147483648
  %v243 = vsel %vm160, %v242, %v241
  %v244 = vsub.s32 4, %v220
  %v245 = vsel %vm160, %v244, %v220
  %v246 = vsel %vm159, %v53, %v243
  %v247 = vsel %vm159, 0, %v245
  %v248 = vcosq.f32.pop %v246
  %v249 = vsinq.f32.pop %v246
  %vm250 = vweird.f32 %v53
  %v251 = vadd.s32 %v247, 3
  %v252 = vand.u32 %v251, 3
  %vm253 = vcmp.lt.s32.totalorder %v252, 2
  %vm254 = vcmp.eq.s32.totalorder %v252, 0
  %v255 = vxor.u32 %v249, 2147483648
  %v256 = vsel %vm254, %v248, %v255
  %vm257 = vcmp.eq.s32.totalorder %v252, 2
  %v258 = vxor.u32 %v248, 2147483648
  %v259 = vsel %vm257, %v258, %v249
  %v260 = vsel %vm253, %v256, %v259
  %v261 = vsel %vm250, nan, %v260
  %263 = vset.pattern.permute.xlu0 0
  %264 = vperm.xlu0 %263, %v22
  %v265 = vpop.permute.xlu0 %264
  %268 = vset.pattern.permute.xlu0 0
  %269 = vperm.xlu0 %268, %v23
  %v270 = vpop.permute.xlu0 %269
  %v272 = vmul.f32 %v265, %v28
  %v273 = vmul.f32 %v270, %v28
  %v274 = vadd.f32 %v157, %v272
  %v275 = vadd.f32 %v261, %v273
  %vm276 = vcmask 15360
  %277 = vst.msk [vmem:[%s4] sm:$0xff] %vm276, %v274
  %vm278 = vcmask 8192
  %279 = vst.msk [vmem:[%s4 + $0x8] sm:$0x1] %vm278, %v275
  // Predicated region
  $region18: #{tpu_custom_call.1} parent=0 // pred_check
    _
  $region19: #{tpu_custom_call.1} parent=0 // pred_check_branch
    %281 = sbr.rel (0) target = $region21
  $region20: #{tpu_custom_call.1} parent=0 // pred_region
    _
  $region21: #{tpu_custom_call.1} parent=0 // pred_fallthru
    _
  // Predicated region
  $region22: #{tpu_custom_call.1} parent=0 // pred_check
    _
  $region23: #{tpu_custom_call.1} parent=0 // pred_check_branch
    %283 = sbr.rel (0) target = $region25
  $region24: #{tpu_custom_call.1} parent=0 // pred_region
    _
  $region25: #{tpu_custom_call.1} parent=0 // pred_fallthru
    _

</llo_original>
